<compile_context>
chip_gen: v7x
topology: tpu7x:2x2x1
jax: 0.10.0
libtpu: 0.0.40
codegen_flags: <defaults>
</compile_context>

<pallas_src>
import functools

import jax
import jax.numpy as jnp
from jax.experimental import pallas as pl
from jax.experimental.pallas import tpu as pltpu


def _ca_loss_kernel(s_ref, t_ref, out_ref, *, inv_tau):
    # Teacher branch: softmax numerator / denominator over the lane (spatial) axis.
    t = t_ref[...].astype(jnp.float32) * inv_tau
    t_max = jnp.max(t, axis=-1, keepdims=True)
    t_exp = jnp.exp(t - t_max)
    t_sum = jnp.sum(t_exp, axis=-1, keepdims=True)          # (tr, 1)

    # Student branch: shifted logits + log-sum-exp.
    s = s_ref[...].astype(jnp.float32) * inv_tau
    s_max = jnp.max(s, axis=-1, keepdims=True)
    s_shift = s - s_max
    s_lse = jnp.log(jnp.sum(jnp.exp(s_shift), axis=-1, keepdims=True))  # (tr, 1)

    # cross = sum_j t_exp * s_shift   (per row)
    cross = jnp.sum(t_exp * s_shift, axis=-1, keepdims=True)            # (tr, 1)

    # -sum_j softmax(t) * log_softmax(s) = s_lse - cross / t_sum
    # EUP approx reciprocal (free slot) + one Newton step -> near-exact; this is
    # only a (tr, 1) per-row vector so it costs nothing either way.
    r = pl.reciprocal(t_sum, approx=True)
    r = r * (2.0 - t_sum * r)

    out_ref[...] = s_lse - cross * r                                    # (tr, 1)


def channel_aware_loss(preds_S, preds_T, tau=1.0):
    assert preds_S.shape == preds_T.shape, "the input dim of preds_S and preds_T differ"
    N, C, W, H = preds_S.shape
    rows = N * C
    L = W * H

    s2 = preds_S.reshape(rows, L)
    t2 = preds_T.reshape(rows, L)
    itemsize = jnp.dtype(s2.dtype).itemsize  # bf16 inputs are accepted; kernel upcasts

    # ---- generation-aware VMEM budget ----------------------------------------
    try:
        vmem_cap = int(pltpu.get_tpu_info().vmem_capacity_bytes)
    except Exception:
        vmem_cap = 64 << 20  # v7x lower bound: safe tile choice on every generation
    usable = int(0.8 * vmem_cap)
    # Per tile element: 2 inputs x 2 pipeline buffers x itemsize (I/O), plus
    # ~6 full-tile f32 temporaries (t_exp, s_shift, exp chains, ...) that Mosaic
    # materializes as internal scratch.
    bytes_per_elem = 4 * itemsize + 6 * 4
    max_tile_elems = max(8 * L, usable // bytes_per_elem)
    # TODO(synk): for extremely large W*H (single row tile > VMEM budget) a
    # column-tiled / online-softmax variant would be needed; tr is floored at 8.
    budget_tr = max(8, (max_tile_elems // L) // 8 * 8)

    rows8 = -(-rows // 8) * 8
    tr = max(8, (min(budget_tr, rows8) // 8) * 8)
    # Avoid >25% padding waste from an over-large row tile.
    while tr > 8 and ((-(-rows8 // tr)) * tr - rows8) * 4 > rows8:
        tr = max(8, (tr // 2) // 8 * 8)

    rows_p = -(-rows // tr) * tr
    if rows_p != rows:
        # Zero-pad rows; padded (all-zero) rows produce finite garbage (log L)
        # and are sliced off before the final sum.
        s2 = jnp.pad(s2, ((0, rows_p - rows), (0, 0)))
        t2 = jnp.pad(t2, ((0, rows_p - rows), (0, 0)))

    grid = (rows_p // tr,)

    est_need = 4 * tr * L * itemsize + 6 * tr * L * 4 + 4 * tr * 4
    vmem_limit = min(int(0.85 * vmem_cap), max(est_need + (8 << 20), 32 << 20))

    kernel = functools.partial(_ca_loss_kernel, inv_tau=float(1.0 / tau))

    cost = pl.CostEstimate(
        flops=8 * rows_p * L,
        transcendentals=2 * rows_p * L,
        bytes_accessed=2 * rows_p * L * itemsize + rows_p * 4,
    )

    row_losses = pl.pallas_call(
        kernel,
        out_shape=jax.ShapeDtypeStruct((rows_p, 1), jnp.float32),
        grid_spec=pltpu.PrefetchScalarGridSpec(
            num_scalar_prefetch=0,
            grid=grid,
            in_specs=[
                pl.BlockSpec((tr, L), lambda i: (i, 0)),
                pl.BlockSpec((tr, L), lambda i: (i, 0)),
            ],
            out_specs=pl.BlockSpec((tr, 1), lambda i: (i, 0)),
        ),
        compiler_params=pltpu.CompilerParams(
            dimension_semantics=("parallel",),   # megacore-shards on v7x, no-op on v5e/v6e
            vmem_limit_bytes=vmem_limit,
        ),
        cost_estimate=cost,
    )(s2, t2)

    return jnp.sum(row_losses[:rows, 0]) / (C * N)


def channel_aware_loss_ref(preds_S, preds_T, tau=1.0):
    # Pure-JAX reference mirroring the PyTorch forward.
    N, C, W, H = preds_S.shape
    s2 = preds_S.reshape(-1, W * H) / tau
    t2 = preds_T.reshape(-1, W * H) / tau
    p_t = jax.nn.softmax(t2, axis=1)
    log_p_s = jax.nn.log_softmax(s2, axis=1)
    return jnp.sum(-p_t * log_p_s) / (C * N)


if __name__ == "__main__":
    key = jax.random.PRNGKey(0)
    k1, k2 = jax.random.split(key)
    N, C, W, H = 2, 4, 16, 16
    preds_S = jax.random.normal(k1, (N, C, W, H), dtype=jnp.float32)
    preds_T = jax.random.normal(k2, (N, C, W, H), dtype=jnp.float32)

    loss = channel_aware_loss(preds_S, preds_T, tau=1.0)
    loss = jax.block_until_ready(loss)

    ref = channel_aware_loss_ref(preds_S, preds_T, tau=1.0)
    assert jnp.allclose(loss, ref, rtol=1e-5, atol=1e-5), (loss, ref)

    print("KERNEL_OK")
</pallas_src>

<mosaic_0001>
module attributes {stable_mosaic.version = 11 : i64} {
  func.func @_ca_loss_kernel(%arg0: i32, %arg1: memref<8x256xf32, #tpu.memory_space<vmem>>, %arg2: memref<8x256xf32, #tpu.memory_space<vmem>>, %arg3: memref<8x1xf32, #tpu.memory_space<vmem>>) attributes {dimension_semantics = [#tpu.dimension_semantics<parallel>], iteration_bounds = array<i64: 1>, scalar_prefetch = 0 : i64, scratch_operands = 0 : i64, tpu.core_type = #tpu.core_type<tc>, window_params = [{transform_indices = @transform_0, window_bounds = array<i64: 8, 256>}, {transform_indices = @transform_1, window_bounds = array<i64: 8, 256>}, {transform_indices = @transform_2, window_bounds = array<i64: 8, 1>}]} {
    %c0 = arith.constant 0 : index
    %c0_0 = arith.constant 0 : index
    %0 = vector.load %arg2[%c0, %c0_0] : memref<8x256xf32, #tpu.memory_space<vmem>>, vector<8x256xf32>
    %cst = arith.constant 1.000000e+00 : f32
    %1 = vector.broadcast %cst : f32 to vector<8x256xf32>
    %2 = arith.mulf %0, %1 : vector<8x256xf32>
    %cst_1 = arith.constant dense<0xFF800000> : vector<8xf32>
    %3 = vector.multi_reduction <maximumf>, %2, %cst_1 [1] : vector<8x256xf32> to vector<8xf32>
    %4 = vector.shape_cast %3 : vector<8xf32> to vector<8x1xf32>
    %5 = vector.broadcast %4 : vector<8x1xf32> to vector<8x256xf32>
    %6 = arith.subf %2, %5 : vector<8x256xf32>
    %7 = math.exp %6 : vector<8x256xf32>
    %cst_2 = arith.constant dense<0.000000e+00> : vector<8xf32>
    %8 = vector.multi_reduction <add>, %7, %cst_2 [1] : vector<8x256xf32> to vector<8xf32>
    %9 = vector.shape_cast %8 : vector<8xf32> to vector<8x1xf32>
    %c0_3 = arith.constant 0 : index
    %c0_4 = arith.constant 0 : index
    %10 = vector.load %arg1[%c0_3, %c0_4] : memref<8x256xf32, #tpu.memory_space<vmem>>, vector<8x256xf32>
    %cst_5 = arith.constant 1.000000e+00 : f32
    %11 = vector.broadcast %cst_5 : f32 to vector<8x256xf32>
    %12 = arith.mulf %10, %11 : vector<8x256xf32>
    %cst_6 = arith.constant dense<0xFF800000> : vector<8xf32>
    %13 = vector.multi_reduction <maximumf>, %12, %cst_6 [1] : vector<8x256xf32> to vector<8xf32>
    %14 = vector.shape_cast %13 : vector<8xf32> to vector<8x1xf32>
    %15 = vector.broadcast %14 : vector<8x1xf32> to vector<8x256xf32>
    %16 = arith.subf %12, %15 : vector<8x256xf32>
    %17 = math.exp %16 : vector<8x256xf32>
    %cst_7 = arith.constant dense<0.000000e+00> : vector<8xf32>
    %18 = vector.multi_reduction <add>, %17, %cst_7 [1] : vector<8x256xf32> to vector<8xf32>
    %19 = vector.shape_cast %18 : vector<8xf32> to vector<8x1xf32>
    %20 = math.log %19 : vector<8x1xf32>
    %21 = arith.mulf %7, %16 : vector<8x256xf32>
    %cst_8 = arith.constant dense<0.000000e+00> : vector<8xf32>
    %22 = vector.multi_reduction <add>, %21, %cst_8 [1] : vector<8x256xf32> to vector<8xf32>
    %23 = vector.shape_cast %22 : vector<8xf32> to vector<8x1xf32>
    %24 = tpu.reciprocal %9 {approx = true} : vector<8x1xf32> -> vector<8x1xf32>
    %25 = arith.mulf %9, %24 : vector<8x1xf32>
    %cst_9 = arith.constant 2.000000e+00 : f32
    %26 = vector.broadcast %cst_9 : f32 to vector<8x1xf32>
    %27 = arith.subf %26, %25 : vector<8x1xf32>
    %28 = arith.mulf %24, %27 : vector<8x1xf32>
    %29 = arith.mulf %23, %28 : vector<8x1xf32>
    %30 = arith.subf %20, %29 : vector<8x1xf32>
    %c0_10 = arith.constant 0 : index
    %c0_11 = arith.constant 0 : index
    %31 = vector.load %arg3[%c0_10, %c0_11] : memref<8x1xf32, #tpu.memory_space<vmem>>, vector<8x1xf32>
    tpu.vector_store %arg3[%c0_10, %c0_11], %30 {strides = array<i32>} : memref<8x1xf32, #tpu.memory_space<vmem>>, vector<8x1xf32>,
    return
  }
  func.func @transform_0(%arg0: i32) -> (i32, i32) {
    %c0_i32 = arith.constant 0 : i32
    %c0_i32_0 = arith.constant 0 : i32
    return %arg0, %c0_i32 : i32, i32
  }
  func.func @transform_1(%arg0: i32) -> (i32, i32) {
    %c0_i32 = arith.constant 0 : i32
    %c0_i32_0 = arith.constant 0 : i32
    return %arg0, %c0_i32 : i32, i32
  }
  func.func @transform_2(%arg0: i32) -> (i32, i32) {
    %c0_i32 = arith.constant 0 : i32
    %c0_i32_0 = arith.constant 0 : i32
    return %arg0, %c0_i32 : i32, i32
  }
}

</mosaic_0001>

<llo_original>
// kernel: tpu_custom_call.1
$region0: #{tpu_custom_call.1}
  #allocation0 [shape = 'u32[]', space=smem, size = 0x4, offset = 0x4, fixed_abs, tag = 'smem constant byte address 0x4 - core index']
  #allocation1 [shape = 'u32[144,128]{1,0:T(1,128)}', space=vmem, size = 0x12000, scoped, tag = 'internal scratch']
  %s0 = inlined_call_operand.hbm [shape: f32[8,256], index: 0, kind: input, shape index: {}]
  %s1 = inlined_call_operand.hbm [shape: f32[8,256], index: 1, kind: input, shape index: {}]
  %s2 = inlined_call_operand.vmem [shape: f32[8,1], index: 2, kind: output, shape index: {}]
  %s3 = sld [smem:[#allocation0]]
  $region26: #{tpu_custom_call.1} parent=0
    _
  %s5 = ssub.s32 1, %s3
  %s6 = scalar_select 0, %s5, %s3
  $region1: #{tpu_custom_call.1} parent=0
    #allocation2 [shape = 'u8[8192]{0}', space=vmem, size = 0x2000, scoped, tag = 'input window, operand 0, single buffered']
    #allocation3 [shape = 's32[1]{0}', space=sflag, size = 0x4, scoped, tag = 'scoped memory for tpu_custom_call.1']
    #allocation4 [shape = 'u8[8192]{0}', space=vmem, size = 0x2000, scoped, tag = 'input window, operand 1, single buffered']
    #allocation5 [shape = 's32[1]{0}', space=sflag, size = 0x4, scoped, tag = 'scoped memory for tpu_custom_call.1']
    %7 = vsyncpa [#allocation3], 0
    %8 = vsyncpa [#allocation5], 0
    // Predicated region
    $region2: #{tpu_custom_call.1} parent=1 // pred_check
      _
    $region3: #{tpu_custom_call.1} parent=1 // pred_check_branch
      %10 = sbr.rel (0) target = $region5
    $region4: #{tpu_custom_call.1} parent=1 // pred_region
      %s12 = ssub.s32 256, 256
      %13 = vsyncadd [#allocation3], %s12
      %s15 = sshll.u32 [#allocation2], 4
      %s16 = int_to_ptr.vmem [resolvable:$true] %s15
      %18 = dma.hbm_to_vmem [thread:$0]  %s0, 256, %s16, [#allocation3]
    $region5: #{tpu_custom_call.1} parent=1 // pred_fallthru
      _
    // Predicated region
    $region6: #{tpu_custom_call.1} parent=1 // pred_check
      _
    $region7: #{tpu_custom_call.1} parent=1 // pred_check_branch
      %20 = sbr.rel (0) target = $region9
    $region8: #{tpu_custom_call.1} parent=1 // pred_region
      %s22 = ssub.s32 256, 256
      %23 = vsyncadd [#allocation5], %s22
      %s25 = sshll.u32 [#allocation4], 4
      %s26 = int_to_ptr.vmem [resolvable:$true] %s25
      %28 = dma.hbm_to_vmem [thread:$0]  %s1, 256, %s26, [#allocation5]
    $region9: #{tpu_custom_call.1} parent=1 // pred_fallthru
      _
    // Predicated region
    $region10: #{tpu_custom_call.1} parent=1 // pred_check
      _
    $region11: #{tpu_custom_call.1} parent=1 // pred_check_branch
      %30 = sbr.rel (0) target = $region13
    $region12: #{tpu_custom_call.1} parent=1 // pred_region
      %31 = dma.done [#allocation3], 256
    $region13: #{tpu_custom_call.1} parent=1 // pred_fallthru
      _
    // Predicated region
    $region14: #{tpu_custom_call.1} parent=1 // pred_check
      _
    $region15: #{tpu_custom_call.1} parent=1 // pred_check_branch
      %33 = sbr.rel (0) target = $region17
    $region16: #{tpu_custom_call.1} parent=1 // pred_region
      %34 = dma.done [#allocation5], 256
    $region17: #{tpu_custom_call.1} parent=1 // pred_fallthru
      _
    %v35 = vld [vmem:[#allocation4] sm:$0xff]
    %v36 = vld [vmem:[#allocation4 + $0x8] sm:$0xff]
    %v37 = vmax.f32 %v35, %v36
    %38 = vmax.xlane.f32.xlu0 %v37
    %v39 = vpop.xlane.xlu0 %38
    %v40 = vsub.f32 %v35, %v39
    %v41 = vsub.f32 %v36, %v39
    %v42 = vmul.f32 %v40, 1.442695
    %v43 = vpow.pop %v42
    %v44 = vmul.f32 %v41, 1.442695
    %v45 = vpow.pop %v44
    %v46 = vadd.f32 %v43, %v45
    %47 = vadd.xlane.f32.xlu0 %v46
    %v48 = vpop.xlane.xlu0 %47
    %v49 = vld [vmem:[#allocation2] sm:$0xff]
    %v50 = vld [vmem:[#allocation2 + $0x8] sm:$0xff]
    %v51 = vmax.f32 %v49, %v50
    %52 = vmax.xlane.f32.xlu0 %v51
    %v53 = vpop.xlane.xlu0 %52
    %v54 = vsub.f32 %v49, %v53
    %v55 = vsub.f32 %v50, %v53
    %v56 = vmul.f32 %v54, 1.442695
    %v57 = vpow.pop %v56
    %v58 = vmul.f32 %v55, 1.442695
    %v59 = vpow.pop %v58
    %v60 = vadd.f32 %v57, %v59
    %61 = vadd.xlane.f32.xlu0 %v60
    %v62 = vpop.xlane.xlu0 %61
    %v63 = vlog2.pop %v62
    %v64 = vmul.f32 %v63, 0.6931472
    %v65 = vmul.f32 %v43, %v54
    %v66 = vmul.f32 %v45, %v55
    %v67 = vadd.f32 %v65, %v66
    %68 = vadd.xlane.f32.xlu0 %v67
    %v69 = vpop.xlane.xlu0 %68
    %v70 = vrcp.pop %v48
    %v71 = vmul.f32 %v48, %v70
    %v72 = vsub.f32 2.0, %v71
    %v73 = vmul.f32 %v70, %v72
    %v74 = vmul.f32 %v69, %v73
    %v75 = vsub.f32 %v64, %v74
    %vm76 = vcmask 7168
    %77 = vst.msk [vmem:[%s2] sm:$0xff] %vm76, %v75
    // Predicated region
    $region18: #{tpu_custom_call.1} parent=1 // pred_check
      _
    $region19: #{tpu_custom_call.1} parent=1 // pred_check_branch
      %79 = sbr.rel (0) target = $region21
    $region20: #{tpu_custom_call.1} parent=1 // pred_region
      _
    $region21: #{tpu_custom_call.1} parent=1 // pred_fallthru
      _
    // Predicated region
    $region22: #{tpu_custom_call.1} parent=1 // pred_check
      _
    $region23: #{tpu_custom_call.1} parent=1 // pred_check_branch
      %81 = sbr.rel (0) target = $region25
    $region24: #{tpu_custom_call.1} parent=1 // pred_region
      _
    $region25: #{tpu_custom_call.1} parent=1 // pred_fallthru
      _
    %82 = vsyncpa [#allocation3], 1
    %83 = vsyncpa [#allocation5], 1

</llo_original>
